<compile_context>
chip_gen: v5e
topology: v5e:2x2
jax: 0.10.0
libtpu: 0.0.40
codegen_flags: <defaults>
</compile_context>

<pallas_src>
import jax
import jax.numpy as jnp
import numpy as np
from jax.experimental import pallas as pl
from jax.experimental.pallas import tpu as pltpu


def _round_up(x, m):
    return ((x + m - 1) // m) * m


def linclassifier_kernel(x_ref, wc_ref, bc_ref, wl_ref, bl_ref, out_ref):
    # x_ref : (L, Bt, C)   bf16 batch tile of embedded sequences (time leading)
    # wc_ref: (K*C, C)     bf16 conv weight, im2col layout (row j = k*C + c_in)
    # bc_ref: (1, C)       f32 conv bias
    # wl_ref: (C, NLp)     bf16 linear weight, pre-transposed, label dim padded to 128
    # bl_ref: (1, NLp)     f32 linear bias (padded label lanes carry -1e30)
    # out_ref: (Bt, NLp)   f32 per-tile, lane-dense output block
    L, Bt, C = x_ref.shape
    K = wc_ref.shape[0] // C
    Lout = L - K + 1

    # im2col: per-tap Ref slices (short live ranges), concatenated along the lane
    # (channel) axis, then one (Lout*Bt, K*C) x (K*C, C) MXU matmul with f32 acc.
    taps = [x_ref[pl.ds(k, Lout)] for k in range(K)]            # K x (Lout, Bt, C)
    im2col = jnp.concatenate(taps, axis=-1)                     # (Lout, Bt, K*C)
    conv = jnp.dot(im2col.reshape(Lout * Bt, K * C), wc_ref[...],
                   preferred_element_type=jnp.float32)          # (Lout*Bt, C) f32

    # Temporal max-pool over Lout (elementwise reduce over the leading dim), then
    # conv bias (time-constant, so adding after the max is exact) and ReLU, in f32.
    pooled = jnp.max(conv.reshape(Lout, Bt, C), axis=0)         # (Bt, C)
    hidden = jnp.maximum(pooled + bc_ref[...], 0.0)             # (Bt, C) f32

    # Linear + log_softmax over (padded) labels; padded lanes have zero weight
    # columns and -1e30 bias, so they contribute exp(.) = 0 to the logsumexp.
    logits = jnp.dot(hidden.astype(wl_ref.dtype), wl_ref[...],
                     preferred_element_type=jnp.float32) + bl_ref[...]   # (Bt, NLp)
    m = jnp.max(logits, axis=1, keepdims=True)
    z = logits - m
    lse = jnp.log(jnp.sum(jnp.exp(z), axis=1, keepdims=True))
    out_ref[...] = (z - lse).astype(out_ref.dtype)


def lin_classifier_forward(token_ids, emb_table, w_conv, b_conv, w_lin, b_lin,
                           block_b=None):
    """token_ids: (B, L) int32; returns log-probs (B, num_labels) float32."""
    B, L = token_ids.shape
    C = emb_table.shape[1]
    NL = w_lin.shape[0]
    K = w_conv.shape[2]

    # Batch tile: multiple of 8 sublanes.  Default 64 samples (~384 MXU rows/step,
    # f32 conv activation ~48 KiB -> no vreg spill pressure).  If the whole batch
    # would fit in a single step, split it so v7x's second TensorCore gets work.
    b8 = _round_up(max(B, 1), 8)
    if block_b is None:
        block_b = 64
    bt = min(_round_up(block_b, 8), b8)
    if b8 >= 16 and bt >= b8:
        bt = max(8, (b8 // 2) // 8 * 8)
    B_pad = _round_up(B, bt)
    NLp = _round_up(NL, 128)          # lane-dense output stores

    # Glue: embedding lookup (frozen pretrained table) + parameter re-layout.
    # The gather stays in XLA: a real pretrained vocab does not fit VMEM, and a
    # manual per-row DMA gather (L*Bt tiny DMAs per tile) would be slower.
    # TODO(synk): fuse the embedding gather in-kernel (scalar-prefetched ids +
    # DMA gather) to skip the (L, B, C) HBM round-trip at large B.
    ids = token_ids
    if B_pad != B:
        ids = jnp.concatenate(
            [ids, jnp.zeros((B_pad - B, L), ids.dtype)], axis=0)
    x = jnp.take(emb_table, ids.T, axis=0).astype(jnp.bfloat16)   # (L, B_pad, C)

    # Conv weight -> im2col layout: row index j = k*C + c_in, column = c_out.
    wck = jnp.transpose(w_conv, (2, 1, 0)).reshape(K * C, C).astype(jnp.bfloat16)
    bc = b_conv.reshape(1, C).astype(jnp.float32)
    wlT = jnp.zeros((C, NLp), jnp.bfloat16).at[:, :NL].set(
        w_lin.T.astype(jnp.bfloat16))
    bl = jnp.full((1, NLp), -1e30, jnp.float32).at[0, :NL].set(
        b_lin.astype(jnp.float32))

    out = pl.pallas_call(
        linclassifier_kernel,
        out_shape=jax.ShapeDtypeStruct((B_pad, NLp), jnp.float32),
        grid_spec=pltpu.PrefetchScalarGridSpec(
            num_scalar_prefetch=0,
            grid=(B_pad // bt,),
            in_specs=[
                pl.BlockSpec((L, bt, C), lambda b: (0, b, 0)),
                # Constant index_maps keep the weights resident across grid steps.
                pl.BlockSpec((K * C, C), lambda b: (0, 0)),
                pl.BlockSpec((1, C), lambda b: (0, 0)),
                pl.BlockSpec((C, NLp), lambda b: (0, 0)),
                pl.BlockSpec((1, NLp), lambda b: (0, 0)),
            ],
            # Per-tile output block: pipelined, lane-dense writeback.
            out_specs=pl.BlockSpec((bt, NLp), lambda b: (b, 0)),
        ),
        compiler_params=pltpu.CompilerParams(
            dimension_semantics=("parallel",)),   # batch axis shards across TCs (v7x)
    )(x, wck, bc, wlT, bl)
    return out[:B, :NL]


def reference_forward(token_ids, emb_table, w_conv, b_conv, w_lin, b_lin):
    """Pure-JAX f32 reference matching PyTorch semantics exactly."""
    e = jnp.take(emb_table, token_ids, axis=0)           # (B, L, C)
    x = jnp.transpose(e, (0, 2, 1))                      # (B, C, L)
    y = jax.lax.conv_general_dilated(
        x, w_conv, window_strides=(1,), padding="VALID",
        dimension_numbers=("NCH", "OIH", "NCH"))         # (B, C, L-2)
    y = y + b_conv[None, :, None]
    y = jnp.max(y, axis=2)
    y = jax.nn.relu(y)
    logits = y @ w_lin.T + b_lin
    return jax.nn.log_softmax(logits, axis=1)


if __name__ == "__main__":
    B, L = 2, 8
    vocab_size, emb_size, num_labels = 50, 32, 2

    key = jax.random.PRNGKey(0)
    k_emb, k_wc, k_bc, k_wl, k_bl, k_tok = jax.random.split(key, 6)

    emb_table = jax.random.normal(k_emb, (vocab_size, emb_size), jnp.float32) * 0.1
    w_conv = jax.random.normal(k_wc, (emb_size, emb_size, 3), jnp.float32) * 0.1
    b_conv = jax.random.normal(k_bc, (emb_size,), jnp.float32) * 0.1
    w_lin = jax.random.normal(k_wl, (num_labels, emb_size), jnp.float32) * 0.1
    b_lin = jax.random.normal(k_bl, (num_labels,), jnp.float32) * 0.1
    token_ids = jax.random.randint(k_tok, (B, L), 0, vocab_size, jnp.int32)

    out = lin_classifier_forward(token_ids, emb_table, w_conv, b_conv, w_lin, b_lin)
    out = jax.block_until_ready(out)

    ref = reference_forward(token_ids, emb_table, w_conv, b_conv, w_lin, b_lin)
    # Tolerance loosened vs. the f32 reference because MXU operands are bf16.
    np.testing.assert_allclose(np.asarray(out), np.asarray(ref), rtol=2e-2, atol=2e-2)

    print("KERNEL_OK")
</pallas_src>

<mosaic_0001>
module attributes {stable_mosaic.version = 11 : i64} {
  func.func @linclassifier_kernel(%arg0: i32, %arg1: memref<8x8x32xbf16, #tpu.memory_space<vmem>>, %arg2: memref<96x32xbf16, #tpu.memory_space<vmem>>, %arg3: memref<1x32xf32, #tpu.memory_space<vmem>>, %arg4: memref<32x128xbf16, #tpu.memory_space<vmem>>, %arg5: memref<1x128xf32, #tpu.memory_space<vmem>>, %arg6: memref<8x128xf32, #tpu.memory_space<vmem>>) attributes {dimension_semantics = [#tpu.dimension_semantics<parallel>], iteration_bounds = array<i64: 1>, scalar_prefetch = 0 : i64, scratch_operands = 0 : i64, tpu.core_type = #tpu.core_type<tc>, window_params = [{transform_indices = @transform_0, window_bounds = array<i64: 8, 8, 32>}, {pipeline_mode = #tpu.pipeline_mode<synchronous>, transform_indices = @transform_1, window_bounds = array<i64: 96, 32>}, {pipeline_mode = #tpu.pipeline_mode<synchronous>, transform_indices = @transform_2, window_bounds = array<i64: 1, 32>}, {pipeline_mode = #tpu.pipeline_mode<synchronous>, transform_indices = @transform_3, window_bounds = array<i64: 32, 128>}, {pipeline_mode = #tpu.pipeline_mode<synchronous>, transform_indices = @transform_4, window_bounds = array<i64: 1, 128>}, {transform_indices = @transform_5, window_bounds = array<i64: 8, 128>}]} {
    %c0 = arith.constant 0 : index
    %c0_0 = arith.constant 0 : index
    %c0_1 = arith.constant 0 : index
    %0 = vector.load %arg1[%c0, %c0_0, %c0_1] : memref<8x8x32xbf16, #tpu.memory_space<vmem>>, vector<6x8x32xbf16>
    %c1 = arith.constant 1 : index
    %c0_2 = arith.constant 0 : index
    %c0_3 = arith.constant 0 : index
    %1 = vector.load %arg1[%c1, %c0_2, %c0_3] : memref<8x8x32xbf16, #tpu.memory_space<vmem>>, vector<6x8x32xbf16>
    %c2 = arith.constant 2 : index
    %c0_4 = arith.constant 0 : index
    %c0_5 = arith.constant 0 : index
    %2 = vector.load %arg1[%c2, %c0_4, %c0_5] : memref<8x8x32xbf16, #tpu.memory_space<vmem>>, vector<6x8x32xbf16>
    %3 = tpu.concatenate %0, %1, %2 in 2 : vector<6x8x32xbf16>, vector<6x8x32xbf16>, vector<6x8x32xbf16> -> vector<6x8x96xbf16>
    %4 = vector.shape_cast %3 : vector<6x8x96xbf16> to vector<48x96xbf16>
    %c0_6 = arith.constant 0 : index
    %c0_7 = arith.constant 0 : index
    %5 = vector.load %arg2[%c0_6, %c0_7] : memref<96x32xbf16, #tpu.memory_space<vmem>>, vector<96x32xbf16>
    %cst = arith.constant dense<0.000000e+00> : vector<48x32xf32>
    %6 = tpu.matmul %4, %5, %cst {dimension_numbers = #tpu.dot_dimension_numbers<[1], [0], [0], [1], [0, 0, 1, 1], [], []>} : vector<48x96xbf16>, vector<96x32xbf16>, vector<48x32xf32> -> vector<48x32xf32>
    %7 = vector.shape_cast %6 : vector<48x32xf32> to vector<6x8x32xf32>
    %cst_8 = arith.constant dense<0xFF800000> : vector<8x32xf32>
    %8 = vector.multi_reduction <maximumf>, %7, %cst_8 [0] : vector<6x8x32xf32> to vector<8x32xf32>
    %c0_9 = arith.constant 0 : index
    %c0_10 = arith.constant 0 : index
    %9 = vector.load %arg3[%c0_9, %c0_10] : memref<1x32xf32, #tpu.memory_space<vmem>>, vector<1x32xf32>
    %10 = vector.broadcast %9 : vector<1x32xf32> to vector<8x32xf32>
    %11 = arith.addf %8, %10 : vector<8x32xf32>
    %cst_11 = arith.constant 0.000000e+00 : f32
    %12 = vector.broadcast %cst_11 : f32 to vector<8x32xf32>
    %13 = arith.maximumf %11, %12 : vector<8x32xf32>
    %14 = arith.truncf %13 : vector<8x32xf32> to vector<8x32xbf16>
    %c0_12 = arith.constant 0 : index
    %c0_13 = arith.constant 0 : index
    %15 = vector.load %arg4[%c0_12, %c0_13] : memref<32x128xbf16, #tpu.memory_space<vmem>>, vector<32x128xbf16>
    %cst_14 = arith.constant dense<0.000000e+00> : vector<8x128xf32>
    %16 = tpu.matmul %14, %15, %cst_14 {dimension_numbers = #tpu.dot_dimension_numbers<[1], [0], [0], [1], [0, 0, 1, 1], [], []>} : vector<8x32xbf16>, vector<32x128xbf16>, vector<8x128xf32> -> vector<8x128xf32>
    %c0_15 = arith.constant 0 : index
    %c0_16 = arith.constant 0 : index
    %17 = vector.load %arg5[%c0_15, %c0_16] : memref<1x128xf32, #tpu.memory_space<vmem>>, vector<1x128xf32>
    %18 = vector.broadcast %17 : vector<1x128xf32> to vector<8x128xf32>
    %19 = arith.addf %16, %18 : vector<8x128xf32>
    %cst_17 = arith.constant dense<0xFF800000> : vector<8xf32>
    %20 = vector.multi_reduction <maximumf>, %19, %cst_17 [1] : vector<8x128xf32> to vector<8xf32>
    %21 = vector.shape_cast %20 : vector<8xf32> to vector<8x1xf32>
    %22 = vector.broadcast %21 : vector<8x1xf32> to vector<8x128xf32>
    %23 = arith.subf %19, %22 : vector<8x128xf32>
    %24 = math.exp %23 : vector<8x128xf32>
    %cst_18 = arith.constant dense<0.000000e+00> : vector<8xf32>
    %25 = vector.multi_reduction <add>, %24, %cst_18 [1] : vector<8x128xf32> to vector<8xf32>
    %26 = vector.shape_cast %25 : vector<8xf32> to vector<8x1xf32>
    %27 = math.log %26 : vector<8x1xf32>
    %28 = vector.broadcast %27 : vector<8x1xf32> to vector<8x128xf32>
    %29 = arith.subf %23, %28 : vector<8x128xf32>
    %c0_19 = arith.constant 0 : index
    %c0_20 = arith.constant 0 : index
    %30 = vector.load %arg6[%c0_19, %c0_20] : memref<8x128xf32, #tpu.memory_space<vmem>>, vector<8x128xf32>
    tpu.vector_store %arg6[%c0_19, %c0_20], %29 {strides = array<i32>} : memref<8x128xf32, #tpu.memory_space<vmem>>, vector<8x128xf32>,
    return
  }
  func.func @transform_0(%arg0: i32) -> (i32, i32, i32) {
    %c0_i32 = arith.constant 0 : i32
    %c0_i32_0 = arith.constant 0 : i32
    %c0_i32_1 = arith.constant 0 : i32
    return %c0_i32, %arg0, %c0_i32_0 : i32, i32, i32
  }
  func.func @transform_1(%arg0: i32) -> (i32, i32) {
    %c0_i32 = arith.constant 0 : i32
    %c0_i32_0 = arith.constant 0 : i32
    %c0_i32_1 = arith.constant 0 : i32
    return %c0_i32, %c0_i32_0 : i32, i32
  }
  func.func @transform_2(%arg0: i32) -> (i32, i32) {
    %c0_i32 = arith.constant 0 : i32
    %c0_i32_0 = arith.constant 0 : i32
    %c0_i32_1 = arith.constant 0 : i32
    return %c0_i32, %c0_i32_0 : i32, i32
  }
  func.func @transform_3(%arg0: i32) -> (i32, i32) {
    %c0_i32 = arith.constant 0 : i32
    %c0_i32_0 = arith.constant 0 : i32
    %c0_i32_1 = arith.constant 0 : i32
    return %c0_i32, %c0_i32_0 : i32, i32
  }
  func.func @transform_4(%arg0: i32) -> (i32, i32) {
    %c0_i32 = arith.constant 0 : i32
    %c0_i32_0 = arith.constant 0 : i32
    %c0_i32_1 = arith.constant 0 : i32
    return %c0_i32, %c0_i32_0 : i32, i32
  }
  func.func @transform_5(%arg0: i32) -> (i32, i32) {
    %c0_i32 = arith.constant 0 : i32
    %c0_i32_0 = arith.constant 0 : i32
    return %arg0, %c0_i32 : i32, i32
  }
}

</mosaic_0001>

<llo_original>
// kernel: tpu_custom_call.1
$region0: #{tpu_custom_call.1}
  #allocation0 [shape = 'u32[]', space=smem, size = 0x4, offset = 0x4, fixed_abs, tag = 'smem constant byte address 0x4 - core index']
  #allocation1 [shape = 'u32[72,128]{1,0:T(1,128)}', space=vmem, size = 0x9000, scoped, tag = 'internal scratch']
  %s0 = inlined_call_operand.vmem [shape: bf16[8,8,32], index: 0, kind: input, shape index: {}]
  %s1 = inlined_call_operand.vmem [shape: bf16[96,32], index: 1, kind: input, shape index: {}]
  %s2 = inlined_call_operand.vmem [shape: f32[1,32], index: 2, kind: input, shape index: {}]
  %s3 = inlined_call_operand.vmem [shape: bf16[32,128], index: 3, kind: input, shape index: {}]
  %s4 = inlined_call_operand.vmem [shape: f32[1,128], index: 4, kind: input, shape index: {}]
  %s5 = inlined_call_operand.hbm [shape: f32[8,128], index: 5, kind: output, shape index: {}]
  %s6 = sld [smem:[#allocation0]]
  $region30: #{tpu_custom_call.1} parent=0
    _
  %s8 = ssub.s32 1, %s6
  %s9 = scalar_select 0, %s8, %s6
  $region1: #{tpu_custom_call.1} parent=0
    #allocation2 [shape = 'u8[4096]{0}', space=vmem, size = 0x1000, scoped, tag = 'output window, operand 0, single buffered']
    #allocation3 [shape = 's32[1]{0}', space=sflag, size = 0x4, scoped, tag = 'scoped memory for tpu_custom_call.1']
    %10 = vsyncpa [#allocation3], 0
    // Predicated region
    $region2: #{tpu_custom_call.1} parent=1 // pred_check
      _
    $region3: #{tpu_custom_call.1} parent=1 // pred_check_branch
      %12 = sbr.rel (0) target = $region5
    $region4: #{tpu_custom_call.1} parent=1 // pred_region
      _
    $region5: #{tpu_custom_call.1} parent=1 // pred_fallthru
      _
    // Predicated region
    $region6: #{tpu_custom_call.1} parent=1 // pred_check
      _
    $region7: #{tpu_custom_call.1} parent=1 // pred_check_branch
      %14 = sbr.rel (0) target = $region9
    $region8: #{tpu_custom_call.1} parent=1 // pred_region
      _
    $region9: #{tpu_custom_call.1} parent=1 // pred_fallthru
      _
    // Predicated region
    $region10: #{tpu_custom_call.1} parent=1 // pred_check
      _
    $region11: #{tpu_custom_call.1} parent=1 // pred_check_branch
      %16 = sbr.rel (0) target = $region13
    $region12: #{tpu_custom_call.1} parent=1 // pred_region
      _
    $region13: #{tpu_custom_call.1} parent=1 // pred_fallthru
      _
    // Predicated region
    $region14: #{tpu_custom_call.1} parent=1 // pred_check
      _
    $region15: #{tpu_custom_call.1} parent=1 // pred_check_branch
      %18 = sbr.rel (0) target = $region17
    $region16: #{tpu_custom_call.1} parent=1 // pred_region
      _
    $region17: #{tpu_custom_call.1} parent=1 // pred_fallthru
      _
    // Predicated region
    $region18: #{tpu_custom_call.1} parent=1 // pred_check
      _
    $region19: #{tpu_custom_call.1} parent=1 // pred_check_branch
      %20 = sbr.rel (0) target = $region21
    $region20: #{tpu_custom_call.1} parent=1 // pred_region
      _
    $region21: #{tpu_custom_call.1} parent=1 // pred_fallthru
      _
    %v22 = vld [vmem:[%s0] sm:$0xf]
    %v23 = vld [vmem:[%s0 + $0x4] sm:$0xf]
    %v24 = vld [vmem:[%s0 + $0x8] sm:$0xf]
    %v25 = vld [vmem:[%s0 + $0xc] sm:$0xf]
    %v26 = vld [vmem:[%s0 + $0x10] sm:$0xf]
    %v27 = vld [vmem:[%s0 + $0x14] sm:$0xf]
    %s28 = scalar_lea.vmem %s0, 4
    %v29 = vld [vmem:[%s28] sm:$0xf]
    %v30 = vld [vmem:[%s28 + $0x4] sm:$0xf]
    %v31 = vld [vmem:[%s28 + $0x8] sm:$0xf]
    %v32 = vld [vmem:[%s28 + $0xc] sm:$0xf]
    %v33 = vld [vmem:[%s28 + $0x10] sm:$0xf]
    %v34 = vld [vmem:[%s28 + $0x14] sm:$0xf]
    %s35 = scalar_lea.vmem %s0, 8
    %v36 = vld [vmem:[%s35] sm:$0xf]
    %v37 = vld [vmem:[%s35 + $0x4] sm:$0xf]
    %v38 = vld [vmem:[%s35 + $0x8] sm:$0xf]
    %v39 = vld [vmem:[%s35 + $0xc] sm:$0xf]
    %v40 = vld [vmem:[%s35 + $0x10] sm:$0xf]
    %v41 = vld [vmem:[%s35 + $0x14] sm:$0xf]
    %v48 = vunpack.c.l.b16 %v29
    %v49 = vunpack.c.l.b16 %v30
    %v50 = vunpack.c.l.b16 %v31
    %v51 = vunpack.c.l.b16 %v32
    %v52 = vunpack.c.l.b16 %v33
    %v53 = vunpack.c.l.b16 %v34
    %v54 = vpack.c.b16 %v48, %v48
    %v55 = vpack.c.b16 %v49, %v49
    %v56 = vpack.c.b16 %v50, %v50
    %v57 = vpack.c.b16 %v51, %v51
    %v58 = vpack.c.b16 %v52, %v52
    %v59 = vpack.c.b16 %v53, %v53
    %60 = vrot.lane.b32.xlu0 %v54, 32
    %v61 = vpop.permute.xlu0 %60
    %62 = vrot.lane.b32.xlu0 %v55, 32
    %v63 = vpop.permute.xlu0 %62
    %64 = vrot.lane.b32.xlu0 %v56, 32
    %v65 = vpop.permute.xlu0 %64
    %66 = vrot.lane.b32.xlu0 %v57, 32
    %v67 = vpop.permute.xlu0 %66
    %68 = vrot.lane.b32.xlu0 %v58, 32
    %v69 = vpop.permute.xlu0 %68
    %70 = vrot.lane.b32.xlu0 %v59, 32
    %v71 = vpop.permute.xlu0 %70
    %v78 = vunpack.c.l.b16 %v36
    %v79 = vunpack.c.l.b16 %v37
    %v80 = vunpack.c.l.b16 %v38
    %v81 = vunpack.c.l.b16 %v39
    %v82 = vunpack.c.l.b16 %v40
    %v83 = vunpack.c.l.b16 %v41
    %v84 = vpack.c.b16 %v78, %v78
    %v85 = vpack.c.b16 %v79, %v79
    %v86 = vpack.c.b16 %v80, %v80
    %v87 = vpack.c.b16 %v81, %v81
    %v88 = vpack.c.b16 %v82, %v82
    %v89 = vpack.c.b16 %v83, %v83
    %90 = vrot.lane.b32.xlu0 %v84, 64
    %v91 = vpop.permute.xlu0 %90
    %92 = vrot.lane.b32.xlu0 %v85, 64
    %v93 = vpop.permute.xlu0 %92
    %94 = vrot.lane.b32.xlu0 %v86, 64
    %v95 = vpop.permute.xlu0 %94
    %96 = vrot.lane.b32.xlu0 %v87, 64
    %v97 = vpop.permute.xlu0 %96
    %98 = vrot.lane.b32.xlu0 %v88, 64
    %v99 = vpop.permute.xlu0 %98
    %100 = vrot.lane.b32.xlu0 %v89, 64
    %v101 = vpop.permute.xlu0 %100
    %vm102 = vcmask 261120
    %v105 = vsel %vm102, %v22, %v61
    %v108 = vsel %vm102, %v23, %v63
    %v111 = vsel %vm102, %v24, %v65
    %v114 = vsel %vm102, %v25, %v67
    %v117 = vsel %vm102, %v26, %v69
    %v120 = vsel %vm102, %v27, %v71
    %vm121 = vcmask 523264
    %v123 = vsel %vm121, %v105, %v91
    %v125 = vsel %vm121, %v108, %v93
    %v127 = vsel %vm121, %v111, %v95
    %v129 = vsel %vm121, %v114, %v97
    %v131 = vsel %vm121, %v117, %v99
    %v133 = vsel %vm121, %v120, %v101
    %v134 = vld [vmem:[%s1] sm:$0xf]
    %v135 = vld [vmem:[%s1 + $0x4] sm:$0xf]
    %v136 = vld [vmem:[%s1 + $0x8] sm:$0xf]
    %v137 = vld [vmem:[%s1 + $0xc] sm:$0xf]
    %v138 = vld [vmem:[%s1 + $0x10] sm:$0xf]
    %v139 = vld [vmem:[%s1 + $0x14] sm:$0xf]
    %v140 = vld [vmem:[%s1 + $0x18] sm:$0xf]
    %v141 = vld [vmem:[%s1 + $0x1c] sm:$0xf]
    %v142 = vld [vmem:[%s1 + $0x20] sm:$0xf]
    %v143 = vld [vmem:[%s1 + $0x24] sm:$0xf]
    %v144 = vld [vmem:[%s1 + $0x28] sm:$0xf]
    %v145 = vld [vmem:[%s1 + $0x2c] sm:$0xf]
    %v152 = vunpack.c.l.b16 %v123
    %v153 = vunpack.c.l.b16 %v125
    %v154 = vunpack.c.l.b16 %v127
    %v155 = vunpack.c.l.b16 %v129
    %v156 = vunpack.c.l.b16 %v131
    %v157 = vunpack.c.l.b16 %v133
    %v158 = vpack.c.b16 %v153, %v152
    %v159 = vpack.c.b16 %v155, %v154
    %v160 = vpack.c.b16 %v157, %v156
    %v173 = vunpack.c.l.b16 %v134
    %v174 = vunpack.c.l.b16 %v135
    %v175 = vunpack.c.l.b16 %v136
    %v176 = vunpack.c.l.b16 %v137
    %v177 = vunpack.c.l.b16 %v138
    %v178 = vunpack.c.l.b16 %v139
    %v179 = vunpack.c.l.b16 %v140
    %v180 = vunpack.c.l.b16 %v141
    %v181 = vunpack.c.l.b16 %v142
    %v182 = vunpack.c.l.b16 %v143
    %v183 = vunpack.c.l.b16 %v144
    %v184 = vunpack.c.l.b16 %v145
    %v185 = vpack.c.b16 %v174, %v173
    %v186 = vpack.c.b16 %v176, %v175
    %v187 = vpack.c.b16 %v178, %v177
    %v188 = vpack.c.b16 %v180, %v179
    %v189 = vpack.c.b16 %v182, %v181
    %v190 = vpack.c.b16 %v184, %v183
    %vm197 = vcmask 785408
    %v199 = vsel %vm197, %v158, 0
    %v202 = vsel %vm197, %v159, 0
    %v205 = vsel %vm197, %v160, 0
    %207 = vmatpush.bf16.msra.mxu0 0
    %208 = vmatpush.bf16.msra.mxu0 0
    %209 = vmatpush.bf16.msra.mxu0 %v190
    %210 = vmatpush.bf16.msra.mxu0 %v189
    %211 = vmatpush.bf16.msra.mxu0 %v188
    %212 = vmatpush.bf16.msra.mxu0 %v187
    %213 = vmatpush.bf16.msra.mxu0 %v186
    %214 = vmatpush.bf16.msra.mxu0 %v185
    %215 = vmatmul.bf16.gmra.mxu0 %v199
    %v216 = vpop.f32.mrf.mxu0
    %v217 = vadd.f32 0.0, %v216
    %v218 = vpop.f32.mrf.mxu0
    %v219 = vadd.f32 0.0, %v218
    %220 = vmatmul.bf16.gmra.mxu0 %v202
    %v221 = vpop.f32.mrf.mxu0
    %v222 = vadd.f32 0.0, %v221
    %v223 = vpop.f32.mrf.mxu0
    %v224 = vadd.f32 0.0, %v223
    %225 = vmatmul.bf16.gmra.mxu0 %v205
    %v226 = vpop.f32.mrf.mxu0
    %v227 = vadd.f32 0.0, %v226
    %v228 = vpop.f32.mrf.mxu0
    %v229 = vadd.f32 0.0, %v228
    %230 = vdwg.mxu0
    %v231 = vsel %vm102, %v217, -inf
    %v232 = vsel %vm102, %v219, -inf
    %v233 = vsel %vm102, %v222, -inf
    %v234 = vsel %vm102, %v224, -inf
    %v235 = vsel %vm102, %v227, -inf
    %v236 = vmax.f32 %v231, %v235
    %v237 = vsel %vm102, %v229, -inf
    %v238 = vmax.f32 %v232, %v237
    %v239 = vmax.f32 %v236, %v238
    %v240 = vmax.f32 %v233, %v234
    %v241 = vmax.f32 %v239, %v240
    %v242 = vld [vmem:[%s2] sm:$0x1]
    %v244 = vperm.slane %v242, 0
    %v246 = vadd.f32 %v241, %v244
    %v247 = vmax.f32 %v246, 0.0
    %v248 = vpack.c.bf16 %v247, %v247
    %v249 = vld [vmem:[%s3] sm:$0xf]
    %v250 = vld [vmem:[%s3 + $0x4] sm:$0xf]
    %v251 = vld [vmem:[%s3 + $0x8] sm:$0xf]
    %v252 = vld [vmem:[%s3 + $0xc] sm:$0xf]
    %v253 = vld [vmem:[%s4] sm:$0x1]
    %v255 = vperm.slane %v253, 0
    %v261 = vunpack.c.l.b16 %v249
    %v262 = vunpack.c.l.b16 %v250
    %v263 = vunpack.c.l.b16 %v251
    %v264 = vunpack.c.l.b16 %v252
    %v265 = vpack.c.b16 %v262, %v261
    %v266 = vpack.c.b16 %v264, %v263
    %v270 = vsel %vm102, %v248, 0
    %272 = vmatpush.bf16.msra.mxu0 0
    %273 = vmatpush.bf16.msra.mxu0 0
    %274 = vmatpush.bf16.msra.mxu0 0
    %275 = vmatpush.bf16.msra.mxu0 0
    %276 = vmatpush.bf16.msra.mxu0 0
    %277 = vmatpush.bf16.msra.mxu0 0
    %278 = vmatpush.bf16.msra.mxu0 %v266
    %279 = vmatpush.bf16.msra.mxu0 %v265
    %280 = vmatmul.bf16.gmra.mxu0 %v270
    %v281 = vpop.f32.mrf.mxu0
    %v282 = vadd.f32 %v255, %v281
    %v283 = vpop.f32.mrf.mxu0
    %284 = vdwg.mxu0
    %285 = vmax.xlane.f32.xlu0 %v282
    %v286 = vpop.xlane.xlu0 %285
    %v287 = vsub.f32 %v282, %v286
    %v288 = vmul.f32 %v287, 1.442695
    %v289 = vpow.pop %v288
    %290 = vadd.xlane.f32.xlu0 %v289
    %v291 = vpop.xlane.xlu0 %290
    %v292 = vlog2.pop %v291
    %v293 = vmul.f32 %v292, 0.6931472
    %v294 = vsub.f32 %v287, %v293
    %295 = vst [vmem:[#allocation2] sm:$0xff] %v294
    // Predicated region
    $region22: #{tpu_custom_call.1} parent=1 // pred_check
      _
    $region23: #{tpu_custom_call.1} parent=1 // pred_check_branch
      %297 = sbr.rel (0) target = $region25
    $region24: #{tpu_custom_call.1} parent=1 // pred_region
      %299 = vsyncadd [#allocation3], 0
      %s301 = sshll.u32 [#allocation2], 4
      %s302 = int_to_ptr.vmem [resolvable:$true] %s301
      %s303 = sshll.u32 %s5, 4
      %s304 = int_to_ptr.hbm [resolvable:$true] %s303
      %306 = dma.vmem_to_hbm [thread:$0]  %s302, 128, %s304, [#allocation3]
    $region25: #{tpu_custom_call.1} parent=1 // pred_fallthru
      _
    // Predicated region
    $region26: #{tpu_custom_call.1} parent=1 // pred_check
      _
    $region27: #{tpu_custom_call.1} parent=1 // pred_check_branch
      %308 = sbr.rel (0) target = $region29
    $region28: #{tpu_custom_call.1} parent=1 // pred_region
      %310 = dma.done [#allocation3], 128
    $region29: #{tpu_custom_call.1} parent=1 // pred_fallthru
      _
    %311 = vsyncpa [#allocation3], 1

</llo_original>
